<compile_context>
chip_gen: v7x
topology: tpu7x:2x2x1
jax: 0.10.0
libtpu: 0.0.40
codegen_flags: <defaults>
</compile_context>

<pallas_src>
import jax
import jax.numpy as jnp
from jax.experimental import pallas as pl
from jax.experimental.pallas import tpu as pltpu


def _fused_embedding_kernel(x_ref, xw_ref, xb_ref, e_ref, ew_ref, eb_ref,
                            xo_ref, eo_ref):
    """Both Linear layers in one kernel invocation.

    Each layer is y = x @ W + b with a tiny contraction dim (9 or 3), so
    instead of a (padded-K) MXU matmul we statically unroll K into
    broadcast-FMAs on the VPU: acc += x[:, k:k+1] * w[k, :].
    """

    def small_k_linear(inp_ref, w_ref, b_ref, out_ref):
        x = inp_ref[...]
        w = w_ref[...]
        n = x.shape[0]
        d = w.shape[1]
        # Start the accumulator from the bias (sublane-broadcast of (1, D)).
        acc = jnp.broadcast_to(b_ref[...], (n, d)).astype(jnp.float32)
        for k in range(x.shape[1]):          # static unroll, K in {9, 3}
            acc = acc + x[:, k:k + 1] * w[k:k + 1, :]
        out_ref[...] = acc.astype(out_ref.dtype)

    small_k_linear(x_ref, xw_ref, xb_ref, xo_ref)
    small_k_linear(e_ref, ew_ref, eb_ref, eo_ref)


@jax.jit
def molecule_embedding_forward(x, edge_attr, atom_w_t, atom_b2d,
                               bond_w_t, bond_b2d):
    """x: (Na, Fa); edge_attr: (Ne, Fe); weights pre-transposed (F, D);
    biases (1, D).  Returns (x_emb (Na, Da), edge_emb (Ne, De))."""
    x = x.astype(jnp.float32)
    edge_attr = edge_attr.astype(jnp.float32)

    Na, Fa = x.shape
    Ne, Fe = edge_attr.shape
    Da = atom_w_t.shape[1]
    De = bond_w_t.shape[1]

    def full(shape):
        # Full-array block: no padding, no tiling needed at these shapes.
        return pl.BlockSpec(shape, lambda i: (0,) * len(shape))

    x_emb, e_emb = pl.pallas_call(
        _fused_embedding_kernel,
        out_shape=(
            jax.ShapeDtypeStruct((Na, Da), jnp.float32),
            jax.ShapeDtypeStruct((Ne, De), jnp.float32),
        ),
        grid=(1,),
        in_specs=[
            full((Na, Fa)), full((Fa, Da)), full((1, Da)),
            full((Ne, Fe)), full((Fe, De)), full((1, De)),
        ],
        out_specs=(full((Na, Da)), full((Ne, De))),
        compiler_params=pltpu.CompilerParams(
            dimension_semantics=("arbitrary",)),
    )(x, atom_w_t, atom_b2d, edge_attr, bond_w_t, bond_b2d)
    return x_emb, e_emb


class MoleculeEmbeddingPallas:
    """Deterministic re-implementation of the PyTorch MoleculeEmbedding."""

    def __init__(self, num_atom_features=9, num_bond_features=3,
                 atom_embedding_dim=256, bond_embedding_dim=32, offset=128):
        key = jax.random.PRNGKey(42)
        k1, k2, k3, k4 = jax.random.split(key, 4)

        # nn.Linear default init: U(-1/sqrt(in), 1/sqrt(in)) for weight & bias.
        def init_linear(kw, kb, fan_in, fan_out):
            bound = 1.0 / (fan_in ** 0.5)
            w = jax.random.uniform(kw, (fan_out, fan_in), jnp.float32,
                                   -bound, bound)
            b = jax.random.uniform(kb, (fan_out,), jnp.float32, -bound, bound)
            return w, b

        atom_w, atom_b = init_linear(k1, k2, num_atom_features,
                                     atom_embedding_dim)
        bond_w, bond_b = init_linear(k3, k4, num_bond_features,
                                     bond_embedding_dim)

        # Keep PyTorch-layout copies for the reference check.
        self.atom_w, self.atom_b = atom_w, atom_b
        self.bond_w, self.bond_b = bond_w, bond_b

        # Cache kernel-layout parameters once: (in, out) weights, (1, D) bias.
        self.atom_w_t = jnp.asarray(atom_w.T)
        self.bond_w_t = jnp.asarray(bond_w.T)
        self.atom_b2d = jnp.asarray(atom_b.reshape(1, -1))
        self.bond_b2d = jnp.asarray(bond_b.reshape(1, -1))

    def __call__(self, x, edge_attr):
        return molecule_embedding_forward(
            x, edge_attr, self.atom_w_t, self.atom_b2d,
            self.bond_w_t, self.bond_b2d)


if __name__ == "__main__":
    key = jax.random.PRNGKey(0)
    k_x, k_e = jax.random.split(key)

    num_atoms, num_edges = 10, 14
    num_atom_features, num_bond_features = 9, 3

    # Integer-valued categorical-ish features, cast to float in forward
    # (mirrors x.float() / edge_attr.float() in the PyTorch module).
    x = jax.random.randint(k_x, (num_atoms, num_atom_features), 0, 20,
                           dtype=jnp.int32)
    edge_attr = jax.random.randint(k_e, (num_edges, num_bond_features), 0, 5,
                                   dtype=jnp.int32)

    model = MoleculeEmbeddingPallas()
    x_emb, e_emb = model(x, edge_attr)
    jax.block_until_ready((x_emb, e_emb))

    # Reference check against plain JAX (PyTorch Linear semantics).
    x_ref = x.astype(jnp.float32) @ model.atom_w.T + model.atom_b
    e_ref = edge_attr.astype(jnp.float32) @ model.bond_w.T + model.bond_b
    assert x_emb.shape == (num_atoms, 256)
    assert e_emb.shape == (num_edges, 32)
    assert jnp.allclose(x_emb, x_ref, atol=1e-4, rtol=1e-4)
    assert jnp.allclose(e_emb, e_ref, atol=1e-4, rtol=1e-4)

    print("KERNEL_OK")
</pallas_src>

<mosaic_0001>
module attributes {stable_mosaic.version = 11 : i64} {
  func.func @_fused_embedding_kernel(%arg0: i32, %arg1: memref<10x9xf32, #tpu.memory_space<vmem>>, %arg2: memref<9x256xf32, #tpu.memory_space<vmem>>, %arg3: memref<1x256xf32, #tpu.memory_space<vmem>>, %arg4: memref<14x3xf32, #tpu.memory_space<vmem>>, %arg5: memref<3x32xf32, #tpu.memory_space<vmem>>, %arg6: memref<1x32xf32, #tpu.memory_space<vmem>>, %arg7: memref<10x256xf32, #tpu.memory_space<vmem>>, %arg8: memref<14x32xf32, #tpu.memory_space<vmem>>) attributes {dimension_semantics = [#tpu.dimension_semantics<arbitrary>], iteration_bounds = array<i64: 1>, scalar_prefetch = 0 : i64, scratch_operands = 0 : i64, tpu.core_type = #tpu.core_type<tc>, window_params = [{pipeline_mode = #tpu.pipeline_mode<synchronous>, transform_indices = @transform_0, window_bounds = array<i64: 10, 9>}, {pipeline_mode = #tpu.pipeline_mode<synchronous>, transform_indices = @transform_1, window_bounds = array<i64: 9, 256>}, {pipeline_mode = #tpu.pipeline_mode<synchronous>, transform_indices = @transform_2, window_bounds = array<i64: 1, 256>}, {pipeline_mode = #tpu.pipeline_mode<synchronous>, transform_indices = @transform_3, window_bounds = array<i64: 14, 3>}, {pipeline_mode = #tpu.pipeline_mode<synchronous>, transform_indices = @transform_4, window_bounds = array<i64: 3, 32>}, {pipeline_mode = #tpu.pipeline_mode<synchronous>, transform_indices = @transform_5, window_bounds = array<i64: 1, 32>}, {pipeline_mode = #tpu.pipeline_mode<synchronous>, transform_indices = @transform_6, window_bounds = array<i64: 10, 256>}, {pipeline_mode = #tpu.pipeline_mode<synchronous>, transform_indices = @transform_7, window_bounds = array<i64: 14, 32>}]} {
    %c0 = arith.constant 0 : index
    %c0_0 = arith.constant 0 : index
    %0 = vector.load %arg1[%c0, %c0_0] : memref<10x9xf32, #tpu.memory_space<vmem>>, vector<10x9xf32>
    %c0_1 = arith.constant 0 : index
    %c0_2 = arith.constant 0 : index
    %1 = vector.load %arg2[%c0_1, %c0_2] : memref<9x256xf32, #tpu.memory_space<vmem>>, vector<9x256xf32>
    %c0_3 = arith.constant 0 : index
    %c0_4 = arith.constant 0 : index
    %2 = vector.load %arg3[%c0_3, %c0_4] : memref<1x256xf32, #tpu.memory_space<vmem>>, vector<1x256xf32>
    %3 = vector.shape_cast %2 : vector<1x256xf32> to vector<1x256xf32>
    %4 = vector.broadcast %3 : vector<1x256xf32> to vector<10x256xf32>
    %5 = vector.extract_strided_slice %0 {offsets = [0, 0], sizes = [10, 1], strides = [1, 1]} : vector<10x9xf32> to vector<10x1xf32>
    %6 = vector.extract_strided_slice %1 {offsets = [0, 0], sizes = [1, 256], strides = [1, 1]} : vector<9x256xf32> to vector<1x256xf32>
    %7 = vector.broadcast %5 : vector<10x1xf32> to vector<10x256xf32>
    %8 = vector.broadcast %6 : vector<1x256xf32> to vector<10x256xf32>
    %9 = arith.mulf %7, %8 : vector<10x256xf32>
    %10 = arith.addf %4, %9 : vector<10x256xf32>
    %11 = vector.extract_strided_slice %0 {offsets = [0, 1], sizes = [10, 1], strides = [1, 1]} : vector<10x9xf32> to vector<10x1xf32>
    %12 = vector.extract_strided_slice %1 {offsets = [1, 0], sizes = [1, 256], strides = [1, 1]} : vector<9x256xf32> to vector<1x256xf32>
    %13 = vector.broadcast %11 : vector<10x1xf32> to vector<10x256xf32>
    %14 = vector.broadcast %12 : vector<1x256xf32> to vector<10x256xf32>
    %15 = arith.mulf %13, %14 : vector<10x256xf32>
    %16 = arith.addf %10, %15 : vector<10x256xf32>
    %17 = vector.extract_strided_slice %0 {offsets = [0, 2], sizes = [10, 1], strides = [1, 1]} : vector<10x9xf32> to vector<10x1xf32>
    %18 = vector.extract_strided_slice %1 {offsets = [2, 0], sizes = [1, 256], strides = [1, 1]} : vector<9x256xf32> to vector<1x256xf32>
    %19 = vector.broadcast %17 : vector<10x1xf32> to vector<10x256xf32>
    %20 = vector.broadcast %18 : vector<1x256xf32> to vector<10x256xf32>
    %21 = arith.mulf %19, %20 : vector<10x256xf32>
    %22 = arith.addf %16, %21 : vector<10x256xf32>
    %23 = vector.extract_strided_slice %0 {offsets = [0, 3], sizes = [10, 1], strides = [1, 1]} : vector<10x9xf32> to vector<10x1xf32>
    %24 = vector.extract_strided_slice %1 {offsets = [3, 0], sizes = [1, 256], strides = [1, 1]} : vector<9x256xf32> to vector<1x256xf32>
    %25 = vector.broadcast %23 : vector<10x1xf32> to vector<10x256xf32>
    %26 = vector.broadcast %24 : vector<1x256xf32> to vector<10x256xf32>
    %27 = arith.mulf %25, %26 : vector<10x256xf32>
    %28 = arith.addf %22, %27 : vector<10x256xf32>
    %29 = vector.extract_strided_slice %0 {offsets = [0, 4], sizes = [10, 1], strides = [1, 1]} : vector<10x9xf32> to vector<10x1xf32>
    %30 = vector.extract_strided_slice %1 {offsets = [4, 0], sizes = [1, 256], strides = [1, 1]} : vector<9x256xf32> to vector<1x256xf32>
    %31 = vector.broadcast %29 : vector<10x1xf32> to vector<10x256xf32>
    %32 = vector.broadcast %30 : vector<1x256xf32> to vector<10x256xf32>
    %33 = arith.mulf %31, %32 : vector<10x256xf32>
    %34 = arith.addf %28, %33 : vector<10x256xf32>
    %35 = vector.extract_strided_slice %0 {offsets = [0, 5], sizes = [10, 1], strides = [1, 1]} : vector<10x9xf32> to vector<10x1xf32>
    %36 = vector.extract_strided_slice %1 {offsets = [5, 0], sizes = [1, 256], strides = [1, 1]} : vector<9x256xf32> to vector<1x256xf32>
    %37 = vector.broadcast %35 : vector<10x1xf32> to vector<10x256xf32>
    %38 = vector.broadcast %36 : vector<1x256xf32> to vector<10x256xf32>
    %39 = arith.mulf %37, %38 : vector<10x256xf32>
    %40 = arith.addf %34, %39 : vector<10x256xf32>
    %41 = vector.extract_strided_slice %0 {offsets = [0, 6], sizes = [10, 1], strides = [1, 1]} : vector<10x9xf32> to vector<10x1xf32>
    %42 = vector.extract_strided_slice %1 {offsets = [6, 0], sizes = [1, 256], strides = [1, 1]} : vector<9x256xf32> to vector<1x256xf32>
    %43 = vector.broadcast %41 : vector<10x1xf32> to vector<10x256xf32>
    %44 = vector.broadcast %42 : vector<1x256xf32> to vector<10x256xf32>
    %45 = arith.mulf %43, %44 : vector<10x256xf32>
    %46 = arith.addf %40, %45 : vector<10x256xf32>
    %47 = vector.extract_strided_slice %0 {offsets = [0, 7], sizes = [10, 1], strides = [1, 1]} : vector<10x9xf32> to vector<10x1xf32>
    %48 = vector.extract_strided_slice %1 {offsets = [7, 0], sizes = [1, 256], strides = [1, 1]} : vector<9x256xf32> to vector<1x256xf32>
    %49 = vector.broadcast %47 : vector<10x1xf32> to vector<10x256xf32>
    %50 = vector.broadcast %48 : vector<1x256xf32> to vector<10x256xf32>
    %51 = arith.mulf %49, %50 : vector<10x256xf32>
    %52 = arith.addf %46, %51 : vector<10x256xf32>
    %53 = vector.extract_strided_slice %0 {offsets = [0, 8], sizes = [10, 1], strides = [1, 1]} : vector<10x9xf32> to vector<10x1xf32>
    %54 = vector.extract_strided_slice %1 {offsets = [8, 0], sizes = [1, 256], strides = [1, 1]} : vector<9x256xf32> to vector<1x256xf32>
    %55 = vector.broadcast %53 : vector<10x1xf32> to vector<10x256xf32>
    %56 = vector.broadcast %54 : vector<1x256xf32> to vector<10x256xf32>
    %57 = arith.mulf %55, %56 : vector<10x256xf32>
    %58 = arith.addf %52, %57 : vector<10x256xf32>
    %c0_5 = arith.constant 0 : index
    %c0_6 = arith.constant 0 : index
    %59 = vector.load %arg7[%c0_5, %c0_6] : memref<10x256xf32, #tpu.memory_space<vmem>>, vector<10x256xf32>
    tpu.vector_store %arg7[%c0_5, %c0_6], %58 {strides = array<i32>} : memref<10x256xf32, #tpu.memory_space<vmem>>, vector<10x256xf32>,
    %c0_7 = arith.constant 0 : index
    %c0_8 = arith.constant 0 : index
    %60 = vector.load %arg4[%c0_7, %c0_8] : memref<14x3xf32, #tpu.memory_space<vmem>>, vector<14x3xf32>
    %c0_9 = arith.constant 0 : index
    %c0_10 = arith.constant 0 : index
    %61 = vector.load %arg5[%c0_9, %c0_10] : memref<3x32xf32, #tpu.memory_space<vmem>>, vector<3x32xf32>
    %c0_11 = arith.constant 0 : index
    %c0_12 = arith.constant 0 : index
    %62 = vector.load %arg6[%c0_11, %c0_12] : memref<1x32xf32, #tpu.memory_space<vmem>>, vector<1x32xf32>
    %63 = vector.shape_cast %62 : vector<1x32xf32> to vector<1x32xf32>
    %64 = vector.broadcast %63 : vector<1x32xf32> to vector<14x32xf32>
    %65 = vector.extract_strided_slice %60 {offsets = [0, 0], sizes = [14, 1], strides = [1, 1]} : vector<14x3xf32> to vector<14x1xf32>
    %66 = vector.extract_strided_slice %61 {offsets = [0, 0], sizes = [1, 32], strides = [1, 1]} : vector<3x32xf32> to vector<1x32xf32>
    %67 = vector.broadcast %65 : vector<14x1xf32> to vector<14x32xf32>
    %68 = vector.broadcast %66 : vector<1x32xf32> to vector<14x32xf32>
    %69 = arith.mulf %67, %68 : vector<14x32xf32>
    %70 = arith.addf %64, %69 : vector<14x32xf32>
    %71 = vector.extract_strided_slice %60 {offsets = [0, 1], sizes = [14, 1], strides = [1, 1]} : vector<14x3xf32> to vector<14x1xf32>
    %72 = vector.extract_strided_slice %61 {offsets = [1, 0], sizes = [1, 32], strides = [1, 1]} : vector<3x32xf32> to vector<1x32xf32>
    %73 = vector.broadcast %71 : vector<14x1xf32> to vector<14x32xf32>
    %74 = vector.broadcast %72 : vector<1x32xf32> to vector<14x32xf32>
    %75 = arith.mulf %73, %74 : vector<14x32xf32>
    %76 = arith.addf %70, %75 : vector<14x32xf32>
    %77 = vector.extract_strided_slice %60 {offsets = [0, 2], sizes = [14, 1], strides = [1, 1]} : vector<14x3xf32> to vector<14x1xf32>
    %78 = vector.extract_strided_slice %61 {offsets = [2, 0], sizes = [1, 32], strides = [1, 1]} : vector<3x32xf32> to vector<1x32xf32>
    %79 = vector.broadcast %77 : vector<14x1xf32> to vector<14x32xf32>
    %80 = vector.broadcast %78 : vector<1x32xf32> to vector<14x32xf32>
    %81 = arith.mulf %79, %80 : vector<14x32xf32>
    %82 = arith.addf %76, %81 : vector<14x32xf32>
    %c0_13 = arith.constant 0 : index
    %c0_14 = arith.constant 0 : index
    %83 = vector.load %arg8[%c0_13, %c0_14] : memref<14x32xf32, #tpu.memory_space<vmem>>, vector<14x32xf32>
    tpu.vector_store %arg8[%c0_13, %c0_14], %82 {strides = array<i32>} : memref<14x32xf32, #tpu.memory_space<vmem>>, vector<14x32xf32>,
    return
  }
  func.func @transform_0(%arg0: i32) -> (i32, i32) {
    %c0_i32 = arith.constant 0 : i32
    %c0_i32_0 = arith.constant 0 : i32
    %c0_i32_1 = arith.constant 0 : i32
    return %c0_i32, %c0_i32_0 : i32, i32
  }
  func.func @transform_1(%arg0: i32) -> (i32, i32) {
    %c0_i32 = arith.constant 0 : i32
    %c0_i32_0 = arith.constant 0 : i32
    %c0_i32_1 = arith.constant 0 : i32
    return %c0_i32, %c0_i32_0 : i32, i32
  }
  func.func @transform_2(%arg0: i32) -> (i32, i32) {
    %c0_i32 = arith.constant 0 : i32
    %c0_i32_0 = arith.constant 0 : i32
    %c0_i32_1 = arith.constant 0 : i32
    return %c0_i32, %c0_i32_0 : i32, i32
  }
  func.func @transform_3(%arg0: i32) -> (i32, i32) {
    %c0_i32 = arith.constant 0 : i32
    %c0_i32_0 = arith.constant 0 : i32
    %c0_i32_1 = arith.constant 0 : i32
    return %c0_i32, %c0_i32_0 : i32, i32
  }
  func.func @transform_4(%arg0: i32) -> (i32, i32) {
    %c0_i32 = arith.constant 0 : i32
    %c0_i32_0 = arith.constant 0 : i32
    %c0_i32_1 = arith.constant 0 : i32
    return %c0_i32, %c0_i32_0 : i32, i32
  }
  func.func @transform_5(%arg0: i32) -> (i32, i32) {
    %c0_i32 = arith.constant 0 : i32
    %c0_i32_0 = arith.constant 0 : i32
    %c0_i32_1 = arith.constant 0 : i32
    return %c0_i32, %c0_i32_0 : i32, i32
  }
  func.func @transform_6(%arg0: i32) -> (i32, i32) {
    %c0_i32 = arith.constant 0 : i32
    %c0_i32_0 = arith.constant 0 : i32
    %c0_i32_1 = arith.constant 0 : i32
    return %c0_i32, %c0_i32_0 : i32, i32
  }
  func.func @transform_7(%arg0: i32) -> (i32, i32) {
    %c0_i32 = arith.constant 0 : i32
    %c0_i32_0 = arith.constant 0 : i32
    %c0_i32_1 = arith.constant 0 : i32
    return %c0_i32, %c0_i32_0 : i32, i32
  }
}

</mosaic_0001>

<llo_original>
// kernel: molecule_embedding_forward.1
$region0: #{molecule_embedding_forward.1}
  #allocation0 [shape = 'u32[]', space=smem, size = 0x4, offset = 0x4, fixed_abs, tag = 'smem constant byte address 0x4 - core index']
  #allocation1 [shape = 'u32[144,128]{1,0:T(1,128)}', space=vmem, size = 0x12000, scoped, tag = 'internal scratch']
  %s0 = inlined_call_operand.vmem [shape: f32[10,9], index: 0, kind: input, shape index: {}]
  %s1 = inlined_call_operand.vmem [shape: f32[9,256], index: 1, kind: input, shape index: {}]
  %s2 = inlined_call_operand.vmem [shape: f32[1,256], index: 2, kind: input, shape index: {}]
  %s3 = inlined_call_operand.vmem [shape: f32[14,3], index: 3, kind: input, shape index: {}]
  %s4 = inlined_call_operand.vmem [shape: f32[3,32], index: 4, kind: input, shape index: {}]
  %s5 = inlined_call_operand.vmem [shape: f32[1,32], index: 5, kind: input, shape index: {}]
  %s6 = inlined_call_operand.hbm [shape: f32[10,256], index: 6, kind: output, shape index: {0}]
  %s7 = inlined_call_operand.hbm [shape: f32[14,32], index: 7, kind: output, shape index: {1}]
  %8 = xla_tuple %s6, %s7
  %s9 = sld [smem:[#allocation0]]
  $region42: #{molecule_embedding_forward.1} parent=0
    _
  %s11 = ssub.s32 1, %s9
  %s12 = scalar_select 0, %s11, %s9
  $region1: #{molecule_embedding_forward.1} parent=0
    #allocation2 [shape = 'u8[16384]{0}', space=vmem, size = 0x4000, scoped, tag = 'output window, operand 0, single buffered']
    #allocation3 [shape = 's32[1]{0}', space=sflag, size = 0x4, scoped, tag = 'scoped memory for molecule_embedding_forward.1']
    #allocation4 [shape = 'u8[8192]{0}', space=vmem, size = 0x2000, scoped, tag = 'output window, operand 1, single buffered']
    #allocation5 [shape = 's32[1]{0}', space=sflag, size = 0x4, scoped, tag = 'scoped memory for molecule_embedding_forward.1']
    %13 = vsyncpa [#allocation3], 0
    %14 = vsyncpa [#allocation5], 0
    // Predicated region
    $region2: #{molecule_embedding_forward.1} parent=1 // pred_check
      _
    $region3: #{molecule_embedding_forward.1} parent=1 // pred_check_branch
      %16 = sbr.rel (0) target = $region5
    $region4: #{molecule_embedding_forward.1} parent=1 // pred_region
      _
    $region5: #{molecule_embedding_forward.1} parent=1 // pred_fallthru
      _
    // Predicated region
    $region6: #{molecule_embedding_forward.1} parent=1 // pred_check
      _
    $region7: #{molecule_embedding_forward.1} parent=1 // pred_check_branch
      %18 = sbr.rel (0) target = $region9
    $region8: #{molecule_embedding_forward.1} parent=1 // pred_region
      _
    $region9: #{molecule_embedding_forward.1} parent=1 // pred_fallthru
      _
    // Predicated region
    $region10: #{molecule_embedding_forward.1} parent=1 // pred_check
      _
    $region11: #{molecule_embedding_forward.1} parent=1 // pred_check_branch
      %20 = sbr.rel (0) target = $region13
    $region12: #{molecule_embedding_forward.1} parent=1 // pred_region
      _
    $region13: #{molecule_embedding_forward.1} parent=1 // pred_fallthru
      _
    // Predicated region
    $region14: #{molecule_embedding_forward.1} parent=1 // pred_check
      _
    $region15: #{molecule_embedding_forward.1} parent=1 // pred_check_branch
      %22 = sbr.rel (0) target = $region17
    $region16: #{molecule_embedding_forward.1} parent=1 // pred_region
      _
    $region17: #{molecule_embedding_forward.1} parent=1 // pred_fallthru
      _
    // Predicated region
    $region18: #{molecule_embedding_forward.1} parent=1 // pred_check
      _
    $region19: #{molecule_embedding_forward.1} parent=1 // pred_check_branch
      %24 = sbr.rel (0) target = $region21
    $region20: #{molecule_embedding_forward.1} parent=1 // pred_region
      _
    $region21: #{molecule_embedding_forward.1} parent=1 // pred_fallthru
      _
    // Predicated region
    $region22: #{molecule_embedding_forward.1} parent=1 // pred_check
      _
    $region23: #{molecule_embedding_forward.1} parent=1 // pred_check_branch
      %26 = sbr.rel (0) target = $region25
    $region24: #{molecule_embedding_forward.1} parent=1 // pred_region
      _
    $region25: #{molecule_embedding_forward.1} parent=1 // pred_fallthru
      _
    %v27 = vld [vmem:[%s0] sm:$0xff]
    %v28 = vld [vmem:[%s0 + $0x8] sm:$0x3]
    %v29 = vld [vmem:[%s1] sm:$0xff]
    %v30 = vld [vmem:[%s1 + $0x8] sm:$0xff]
    %v31 = vld [vmem:[%s1 + $0x10] sm:$0x1]
    %v32 = vld [vmem:[%s1 + $0x18] sm:$0x1]
    %v33 = vld [vmem:[%s2] sm:$0x3]
    %v35 = vlaneseq
    %v36 = vshrl.u32 %v35, 7
    %v37 = vsub.s32 0, %v36
    %v38 = vrot.slane %v33, %v37
    %v39 = vlaneseq
    %v40 = vshrl.u32 %v39, 7
    %v41 = vsub.s32 1, %v40
    %v42 = vrot.slane %v33, %v41
    %46 = vset.pattern.permute.xlu0 0
    %47 = vperm.xlu0 %46, %v27
    %v48 = vpop.permute.xlu0 %47
    %51 = vset.pattern.permute.xlu0 0
    %52 = vperm.xlu0 %51, %v28
    %v53 = vpop.permute.xlu0 %52
    %v55 = vlaneseq
    %v56 = vshrl.u32 %v55, 7
    %v57 = vsub.s32 0, %v56
    %v58 = vrot.slane %v29, %v57
    %v59 = vlaneseq
    %v60 = vshrl.u32 %v59, 7
    %v61 = vsub.s32 0, %v60
    %v62 = vrot.slane %v30, %v61
    %v63 = vmul.f32 %v48, %v58
    %v64 = vmul.f32 %v48, %v62
    %v65 = vmul.f32 %v53, %v58
    %v66 = vmul.f32 %v53, %v62
    %v67 = vadd.f32 %v38, %v63
    %v68 = vadd.f32 %v42, %v64
    %v69 = vadd.f32 %v38, %v65
    %v70 = vadd.f32 %v42, %v66
    %71 = vset.pattern.permute.xlu0 1
    %72 = vperm.xlu0 %71, %v27
    %v73 = vpop.permute.xlu0 %72
    %75 = vset.pattern.permute.xlu0 1
    %76 = vperm.xlu0 %75, %v28
    %v77 = vpop.permute.xlu0 %76
    %v79 = vlaneseq
    %v80 = vshrl.u32 %v79, 7
    %v81 = vsub.s32 1, %v80
    %v82 = vrot.slane %v29, %v81
    %v83 = vlaneseq
    %v84 = vshrl.u32 %v83, 7
    %v85 = vsub.s32 1, %v84
    %v86 = vrot.slane %v30, %v85
    %v87 = vmul.f32 %v73, %v82
    %v88 = vmul.f32 %v73, %v86
    %v89 = vmul.f32 %v77, %v82
    %v90 = vmul.f32 %v77, %v86
    %v91 = vadd.f32 %v67, %v87
    %v92 = vadd.f32 %v68, %v88
    %v93 = vadd.f32 %v69, %v89
    %v94 = vadd.f32 %v70, %v90
    %95 = vset.pattern.permute.xlu0 2
    %96 = vperm.xlu0 %95, %v27
    %v97 = vpop.permute.xlu0 %96
    %99 = vset.pattern.permute.xlu0 2
    %100 = vperm.xlu0 %99, %v28
    %v101 = vpop.permute.xlu0 %100
    %v103 = vlaneseq
    %v104 = vshrl.u32 %v103, 7
    %v105 = vsub.s32 2, %v104
    %v106 = vrot.slane %v29, %v105
    %v107 = vlaneseq
    %v108 = vshrl.u32 %v107, 7
    %v109 = vsub.s32 2, %v108
    %v110 = vrot.slane %v30, %v109
    %v111 = vmul.f32 %v97, %v106
    %v112 = vmul.f32 %v97, %v110
    %v113 = vmul.f32 %v101, %v106
    %v114 = vmul.f32 %v101, %v110
    %v115 = vadd.f32 %v91, %v111
    %v116 = vadd.f32 %v92, %v112
    %v117 = vadd.f32 %v93, %v113
    %v118 = vadd.f32 %v94, %v114
    %119 = vset.pattern.permute.xlu0 3
    %120 = vperm.xlu0 %119, %v27
    %v121 = vpop.permute.xlu0 %120
    %123 = vset.pattern.permute.xlu0 3
    %124 = vperm.xlu0 %123, %v28
    %v125 = vpop.permute.xlu0 %124
    %v127 = vlaneseq
    %v128 = vshrl.u32 %v127, 7
    %v129 = vsub.s32 3, %v128
    %v130 = vrot.slane %v29, %v129
    %v131 = vlaneseq
    %v132 = vshrl.u32 %v131, 7
    %v133 = vsub.s32 3, %v132
    %v134 = vrot.slane %v30, %v133
    %v135 = vmul.f32 %v121, %v130
    %v136 = vmul.f32 %v121, %v134
    %v137 = vmul.f32 %v125, %v130
    %v138 = vmul.f32 %v125, %v134
    %v139 = vadd.f32 %v115, %v135
    %v140 = vadd.f32 %v116, %v136
    %v141 = vadd.f32 %v117, %v137
    %v142 = vadd.f32 %v118, %v138
    %143 = vset.pattern.permute.xlu0 4
    %144 = vperm.xlu0 %143, %v27
    %v145 = vpop.permute.xlu0 %144
    %147 = vset.pattern.permute.xlu0 4
    %148 = vperm.xlu0 %147, %v28
    %v149 = vpop.permute.xlu0 %148
    %v151 = vlaneseq
    %v152 = vshrl.u32 %v151, 7
    %v153 = vsub.s32 4, %v152
    %v154 = vrot.slane %v29, %v153
    %v155 = vlaneseq
    %v156 = vshrl.u32 %v155, 7
    %v157 = vsub.s32 4, %v156
    %v158 = vrot.slane %v30, %v157
    %v159 = vmul.f32 %v145, %v154
    %v160 = vmul.f32 %v145, %v158
    %v161 = vmul.f32 %v149, %v154
    %v162 = vmul.f32 %v149, %v158
    %v163 = vadd.f32 %v139, %v159
    %v164 = vadd.f32 %v140, %v160
    %v165 = vadd.f32 %v141, %v161
    %v166 = vadd.f32 %v142, %v162
    %167 = vset.pattern.permute.xlu0 5
    %168 = vperm.xlu0 %167, %v27
    %v169 = vpop.permute.xlu0 %168
    %171 = vset.pattern.permute.xlu0 5
    %172 = vperm.xlu0 %171, %v28
    %v173 = vpop.permute.xlu0 %172
    %v175 = vlaneseq
    %v176 = vshrl.u32 %v175, 7
    %v177 = vsub.s32 5, %v176
    %v178 = vrot.slane %v29, %v177
    %v179 = vlaneseq
    %v180 = vshrl.u32 %v179, 7
    %v181 = vsub.s32 5, %v180
    %v182 = vrot.slane %v30, %v181
    %v183 = vmul.f32 %v169, %v178
    %v184 = vmul.f32 %v169, %v182
    %v185 = vmul.f32 %v173, %v178
    %v186 = vmul.f32 %v173, %v182
    %v187 = vadd.f32 %v163, %v183
    %v188 = vadd.f32 %v164, %v184
    %v189 = vadd.f32 %v165, %v185
    %v190 = vadd.f32 %v166, %v186
    %191 = vset.pattern.permute.xlu0 6
    %192 = vperm.xlu0 %191, %v27
    %v193 = vpop.permute.xlu0 %192
    %195 = vset.pattern.permute.xlu0 6
    %196 = vperm.xlu0 %195, %v28
    %v197 = vpop.permute.xlu0 %196
    %v199 = vlaneseq
    %v200 = vshrl.u32 %v199, 7
    %v201 = vsub.s32 6, %v200
    %v202 = vrot.slane %v29, %v201
    %v203 = vlaneseq
    %v204 = vshrl.u32 %v203, 7
    %v205 = vsub.s32 6, %v204
    %v206 = vrot.slane %v30, %v205
    %v207 = vmul.f32 %v193, %v202
    %v208 = vmul.f32 %v193, %v206
    %v209 = vmul.f32 %v197, %v202
    %v210 = vmul.f32 %v197, %v206
    %v211 = vadd.f32 %v187, %v207
    %v212 = vadd.f32 %v188, %v208
    %v213 = vadd.f32 %v189, %v209
    %v214 = vadd.f32 %v190, %v210
    %215 = vset.pattern.permute.xlu0 7
    %216 = vperm.xlu0 %215, %v27
    %v217 = vpop.permute.xlu0 %216
    %219 = vset.pattern.permute.xlu0 7
    %220 = vperm.xlu0 %219, %v28
    %v221 = vpop.permute.xlu0 %220
    %v223 = vlaneseq
    %v224 = vshrl.u32 %v223, 7
    %v225 = vsub.s32 7, %v224
    %v226 = vrot.slane %v29, %v225
    %v227 = vlaneseq
    %v228 = vshrl.u32 %v227, 7
    %v229 = vsub.s32 7, %v228
    %v230 = vrot.slane %v30, %v229
    %v231 = vmul.f32 %v217, %v226
    %v232 = vmul.f32 %v217, %v230
    %v233 = vmul.f32 %v221, %v226
    %v234 = vmul.f32 %v221, %v230
    %v235 = vadd.f32 %v211, %v231
    %v236 = vadd.f32 %v212, %v232
    %v237 = vadd.f32 %v213, %v233
    %v238 = vadd.f32 %v214, %v234
    %239 = vset.pattern.permute.xlu0 8
    %240 = vperm.xlu0 %239, %v27
    %v241 = vpop.permute.xlu0 %240
    %243 = vset.pattern.permute.xlu0 8
    %244 = vperm.xlu0 %243, %v28
    %v245 = vpop.permute.xlu0 %244
    %v247 = vlaneseq
    %v248 = vshrl.u32 %v247, 7
    %v249 = vsub.s32 0, %v248
    %v250 = vrot.slane %v31, %v249
    %v251 = vlaneseq
    %v252 = vshrl.u32 %v251, 7
    %v253 = vsub.s32 0, %v252
    %v254 = vrot.slane %v32, %v253
    %v255 = vmul.f32 %v241, %v250
    %v256 = vmul.f32 %v241, %v254
    %v257 = vmul.f32 %v245, %v250
    %v258 = vmul.f32 %v245, %v254
    %v259 = vadd.f32 %v235, %v255
    %v260 = vadd.f32 %v236, %v256
    %v261 = vadd.f32 %v237, %v257
    %v262 = vadd.f32 %v238, %v258
    %263 = vst [vmem:[#allocation2] sm:$0xff] %v259
    %264 = vst [vmem:[#allocation2 + $0x8] sm:$0xff] %v260
    %265 = vst [vmem:[#allocation2 + $0x10] sm:$0x3] %v261
    %266 = vst [vmem:[#allocation2 + $0x18] sm:$0x3] %v262
    %v267 = vld [vmem:[%s3] sm:$0xff]
    %v268 = vld [vmem:[%s3 + $0x8] sm:$0x3f]
    %v269 = vld [vmem:[%s4] sm:$0x7]
    %v270 = vld [vmem:[%s5] sm:$0x1]
    %v272 = vlaneseq
    %v273 = vshrl.u32 %v272, 7
    %v274 = vsub.s32 0, %v273
    %v275 = vrot.slane %v270, %v274
    %278 = vset.pattern.permute.xlu0 0
    %279 = vperm.xlu0 %278, %v267
    %v280 = vpop.permute.xlu0 %279
    %283 = vset.pattern.permute.xlu0 0
    %284 = vperm.xlu0 %283, %v268
    %v285 = vpop.permute.xlu0 %284
    %v287 = vlaneseq
    %v288 = vshrl.u32 %v287, 7
    %v289 = vsub.s32 0, %v288
    %v290 = vrot.slane %v269, %v289
    %v291 = vmul.f32 %v280, %v290
    %v292 = vmul.f32 %v285, %v290
    %v293 = vadd.f32 %v275, %v291
    %v294 = vadd.f32 %v275, %v292
    %295 = vset.pattern.permute.xlu0 1
    %296 = vperm.xlu0 %295, %v267
    %v297 = vpop.permute.xlu0 %296
    %299 = vset.pattern.permute.xlu0 1
    %300 = vperm.xlu0 %299, %v268
    %v301 = vpop.permute.xlu0 %300
    %v303 = vlaneseq
    %v304 = vshrl.u32 %v303, 7
    %v305 = vsub.s32 1, %v304
    %v306 = vrot.slane %v269, %v305
    %v307 = vmul.f32 %v297, %v306
    %v308 = vmul.f32 %v301, %v306
    %v309 = vadd.f32 %v293, %v307
    %v310 = vadd.f32 %v294, %v308
    %311 = vset.pattern.permute.xlu0 2
    %312 = vperm.xlu0 %311, %v267
    %v313 = vpop.permute.xlu0 %312
    %315 = vset.pattern.permute.xlu0 2
    %316 = vperm.xlu0 %315, %v268
    %v317 = vpop.permute.xlu0 %316
    %v319 = vlaneseq
    %v320 = vshrl.u32 %v319, 7
    %v321 = vsub.s32 2, %v320
    %v322 = vrot.slane %v269, %v321
    %v323 = vmul.f32 %v313, %v322
    %v324 = vmul.f32 %v317, %v322
    %v325 = vadd.f32 %v309, %v323
    %v326 = vadd.f32 %v310, %v324
    %vm327 = vcmask 261120
    %328 = vst.msk [vmem:[#allocation4] sm:$0xff] %vm327, %v325
    %vm329 = vcmask 259072
    %330 = vst.msk [vmem:[#allocation4 + $0x8] sm:$0x3f] %vm329, %v326
    // Predicated region
    $region26: #{molecule_embedding_forward.1} parent=1 // pred_check
      _
    $region27: #{molecule_embedding_forward.1} parent=1 // pred_check_branch
      %332 = sbr.rel (0) target = $region29
    $region28: #{molecule_embedding_forward.1} parent=1 // pred_region
      %s334 = ssub.s32 512, 512
      %335 = vsyncadd [#allocation3], %s334
      %s336 = sshll.u32 [#allocation2], 4
      %s337 = int_to_ptr.vmem [resolvable:$true] %s336
      %342 = dma.vmem_to_hbm [thread:$0]  %s337, 512, %s6, [#allocation3], 256, 256, 16
    $region29: #{molecule_embedding_forward.1} parent=1 // pred_fallthru
      _
    // Predicated region
    $region30: #{molecule_embedding_forward.1} parent=1 // pred_check
      _
    $region31: #{molecule_embedding_forward.1} parent=1 // pred_check_branch
      %344 = sbr.rel (0) target = $region33
    $region32: #{molecule_embedding_forward.1} parent=1 // pred_region
      %s346 = ssub.s32 256, 256
      %347 = vsyncadd [#allocation5], %s346
      %s348 = sshll.u32 [#allocation4], 4
      %s349 = int_to_ptr.vmem [resolvable:$true] %s348
      %354 = dma.vmem_to_hbm [thread:$0]  %s349, 256, %s7, [#allocation5], 128, 128, 8
    $region33: #{molecule_embedding_forward.1} parent=1 // pred_fallthru
      _
    // Predicated region
    $region34: #{molecule_embedding_forward.1} parent=1 // pred_check
      _
    $region35: #{molecule_embedding_forward.1} parent=1 // pred_check_branch
      %356 = sbr.rel (0) target = $region37
    $region36: #{molecule_embedding_forward.1} parent=1 // pred_region
      %357 = dma.done [#allocation3], 512
    $region37: #{molecule_embedding_forward.1} parent=1 // pred_fallthru
      _
    // Predicated region
    $region38: #{molecule_embedding_forward.1} parent=1 // pred_check
      _
    $region39: #{molecule_embedding_forward.1} parent=1 // pred_check_branch
      %359 = sbr.rel (0) target = $region41
    $region40: #{molecule_embedding_forward.1} parent=1 // pred_region
      %360 = dma.done [#allocation5], 256
    $region41: #{molecule_embedding_forward.1} parent=1 // pred_fallthru
      _
    %361 = vsyncpa [#allocation3], 1
    %362 = vsyncpa [#allocation5], 1

</llo_original>
